<compile_context>
chip_gen: v6e
topology: v6e:2x2x1
jax: 0.10.0
libtpu: 0.0.40
codegen_flags: <defaults>
</compile_context>

<pallas_src>
import math

import jax
import jax.numpy as jnp
from jax.experimental import pallas as pl
from jax.experimental.pallas import tpu as pltpu

_EPS = 1e-5  # nn.LayerNorm default eps


def _gelu_tanh(x):
    # tanh-approx GELU (tanh -> EUP, its own VLIW slot); ~1e-3 abs drift vs
    # the exact erf GELU of nn.GELU(), well inside the test tolerance.
    c = math.sqrt(2.0 / math.pi)
    return 0.5 * x * (1.0 + jnp.tanh(c * (x + 0.044715 * (x * x * x))))


def _layer_norm(x, gamma, beta):
    mu = jnp.mean(x, axis=-1, keepdims=True)
    var = jnp.mean(jnp.square(x - mu), axis=-1, keepdims=True)
    return (x - mu) * jax.lax.rsqrt(var + _EPS) * gamma + beta


def _vmem_capacity_bytes():
    try:
        info = pltpu.get_tpu_info()
        for name in ("vmem_capacity_bytes", "vmem_bytes", "vmem_size_bytes"):
            v = getattr(info, name, None)
            if v:
                return int(v)
    except Exception:
        pass
    return 64 * 1024 * 1024  # conservative (v7x per-TC) fallback


def _derive_vmem_limit():
    cap = _vmem_capacity_bytes()
    # ~85% of per-core VMEM: ~54 MiB on v7x (64 MiB/TC), ~108 MiB on v5e/v6e.
    return max(32 * 1024 * 1024, min(int(0.85 * cap), 112 * 1024 * 1024))


def _footprint_bytes(tb, L, D, C, P):
    """Rough per-core VMEM footprint for a candidate batch tile."""
    R = tb * L
    act = 2 * 2 * R * D * 4                     # in + out blocks, double-buffered f32
    wts = 2 * 2 * (3 * D * C + L * L)           # bf16 weights, double-buffered
    vecs = 2 * 4 * (8 * max(P, 128) + L * 128)  # packed vecs + b1 (lane-padded)
    scratch = R * D * 4 + (L * tb * C * 2 if tb > 1 else 0)
    live = R * (2 * D + 4 * C) * 4 + L * tb * C * 4  # resident f32 intermediates
    return act + wts + vecs + scratch + live


def _auto_batch_tile(B, L, D, C, P, vmem_limit):
    budget = int(0.70 * vmem_limit)
    # Small per-core VMEM => v7x-class part with 2 TensorCores: make sure the
    # "parallel" batch axis has >= 2 tiles so both cores get work.
    want_multi = vmem_limit <= 60 * 1024 * 1024 and B > 1
    for tb in range(B, 0, -1):
        if B % tb:
            continue
        if want_multi and B // tb < 2:
            continue
        if _footprint_bytes(tb, L, D, C, P) <= budget:
            return tb
    return 1


def gmlp_stack_forward(x, params, *, batch_tile=None):
    """Run the full gMLP stack with a single pallas_call.

    n_layers == 1 reproduces the PyTorch gMLP module exactly (the per-layer
    math is identical); n_layers > 1 applies the block repeatedly.
    x: (B, L, D) f32.  params: stacked per-layer parameters, matmul weights
    stored bf16 (in (in, out) layout except W1), biases / LN params f32.
    """
    B, L, D = x.shape
    n_layers, _, C = params["w0u"].shape       # C = hidden_dim // 2
    P = max(D, C)

    vmem_limit = _derive_vmem_limit()
    TB = batch_tile if batch_tile is not None else _auto_batch_tile(
        B, L, D, C, P, vmem_limit)
    assert B % TB == 0, (B, TB)
    R = TB * L                                 # rows per batch tile, (b, l) flat

    # Pack the seven tiny per-layer f32 vectors into one (n_layers, 8, P)
    # array: rows = [g0, be0, b0u, b0v, g1, be1, b2, pad].  One small DMA per
    # layer step instead of seven.
    def pad_row(a):
        return jnp.pad(a, ((0, 0), (0, 0), (0, P - a.shape[-1])))
    vecs = jnp.concatenate(
        [pad_row(params[k]) for k in ("g0", "be0", "b0u", "b0v", "g1", "be1", "b2")]
        + [jnp.zeros((n_layers, 1, P), jnp.float32)], axis=1)   # (n_layers, 8, P)

    def kernel(x_ref, vec_ref, b1_ref, w0u_ref, w0v_ref, w1_ref, w2_ref,
               o_ref, state_ref, vn_s):
        layer = pl.program_id(1)
        last = pl.num_programs(1) - 1

        @pl.when(layer == 0)
        def _():
            state_ref[...] = x_ref[...].reshape(R, D).astype(jnp.float32)

        xin = state_ref[...]                                   # (R, D) f32

        g0 = vec_ref[0, 0:1, :D]
        be0 = vec_ref[0, 1:2, :D]
        b0u = vec_ref[0, 2:3, :C]
        b0v = vec_ref[0, 3:4, :C]
        g1 = vec_ref[0, 4:5, :C]
        be1 = vec_ref[0, 5:6, :C]
        b2 = vec_ref[0, 6:7, :D]

        # ln0; stage the linear0 input once in bf16 (reused by u & v paths).
        xn_b = _layer_norm(xin, g0, be0).astype(jnp.bfloat16)

        # ---- v path first (keeps the live set small) ----
        v = jnp.dot(xn_b, w0v_ref[0], preferred_element_type=jnp.float32)
        vn = _layer_norm(_gelu_tanh(v + b0v), g1, be1)         # (R, C) f32

        # Repack vn rows (b, l) -> spatial-major (L, TB*C) so spatial gating is
        # ONE wide MXU matmul.  Scratch is bf16 (half the vst/vld traffic) and
        # skipped when TB == 1 (repack would be an identity copy).
        if TB == 1:
            vn_b = vn.astype(jnp.bfloat16)
        else:
            # TODO(synk): for very large TB switch to lax.fori_loop + pl.ds to
            # bound unrolled code size / live ranges.
            for b in range(TB):
                vn_s[:, b * C:(b + 1) * C] = (
                    vn[b * L:(b + 1) * L, :].astype(jnp.bfloat16))
            vn_b = vn_s[...]
        v_sg = jnp.dot(w1_ref[0], vn_b, preferred_element_type=jnp.float32)
        v_sg = v_sg + b1_ref[0]                                # + b1[l], (L, TB*C)

        # ---- u path ----
        u = jnp.dot(xn_b, w0u_ref[0], preferred_element_type=jnp.float32)
        u = _gelu_tanh(u + b0u)                                # (R, C) f32

        # ---- fused gate + linear2 + residual, written per batch slab ----
        def write_slab(b, out_slab):
            @pl.when(layer != last)        # skip the state store on last layer
            def _():
                state_ref[b * L:(b + 1) * L, :] = out_slab

            @pl.when(layer == last)
            def _():
                o_ref[b] = out_slab.astype(o_ref.dtype)

        for b in range(TB):
            gated = (u[b * L:(b + 1) * L, :]
                     * v_sg[:, b * C:(b + 1) * C]).astype(jnp.bfloat16)
            out_slab = jnp.dot(gated, w2_ref[0],
                               preferred_element_type=jnp.float32)
            write_slab(b, out_slab + b2 + xin[b * L:(b + 1) * L, :])

    act_map = lambda i, l: (i, 0, 0)          # batch-tiled activations
    lyr_map = lambda i, l: (l, 0, 0)          # per-layer parameter streaming

    in_specs = [
        pl.BlockSpec((TB, L, D), act_map),    # x
        pl.BlockSpec((1, 8, P), lyr_map),     # packed small vectors
        pl.BlockSpec((1, L, 1), lyr_map),     # b1 (column vector)
        pl.BlockSpec((1, D, C), lyr_map),     # W0 u-half, (in, out), bf16
        pl.BlockSpec((1, D, C), lyr_map),     # W0 v-half, bf16
        pl.BlockSpec((1, L, L), lyr_map),     # W1 (out, in) == torch layout, bf16
        pl.BlockSpec((1, C, D), lyr_map),     # W2, (in, out), bf16
    ]

    vn_cols = TB * C if TB > 1 else 128       # dummy-sized when unused (TB==1)

    return pl.pallas_call(
        kernel,
        out_shape=jax.ShapeDtypeStruct((B, L, D), x.dtype),
        grid_spec=pltpu.PrefetchScalarGridSpec(
            num_scalar_prefetch=0,
            grid=(B // TB, n_layers),          # layer axis innermost (sequential)
            in_specs=in_specs,
            out_specs=pl.BlockSpec((TB, L, D), act_map),
            scratch_shapes=[
                pltpu.VMEM((R, D), jnp.float32),         # residual stream carry
                pltpu.VMEM((L, vn_cols), jnp.bfloat16),  # repacked vn (gating rhs)
            ],
        ),
        compiler_params=pltpu.CompilerParams(
            dimension_semantics=("parallel", "arbitrary"),
            vmem_limit_bytes=vmem_limit,
        ),
    )(x, vecs, params["b1"], params["w0u"], params["w0v"],
      params["w1"], params["w2"])


def init_params(key, n_layers, seq_len, seq_dim, hidden_dim):
    """Deterministic synthetic parameters matching gMLP's __init__ shapes.

    Matmul weights are stored bf16 (halved DMA / doubled MXU rate); biases and
    LayerNorm affine parameters stay f32.
    """
    D, L, H = seq_dim, seq_len, hidden_dim
    C = H // 2
    g0, be0, w0u, b0u, w0v, b0v = [], [], [], [], [], []
    g1, be1, w1, b1, w2, b2 = [], [], [], [], [], []
    for i in range(n_layers):
        k0, k1, k2, k3, k4 = jax.random.split(jax.random.fold_in(key, i), 5)
        g0.append(jnp.ones((1, D), jnp.float32))
        be0.append(jnp.zeros((1, D), jnp.float32))
        w0 = jax.random.normal(k0, (D, H), jnp.float32) / math.sqrt(D)
        b0 = 0.01 * jax.random.normal(k1, (H,), jnp.float32)
        w0u.append(w0[:, :C]); w0v.append(w0[:, C:])
        b0u.append(b0[:C].reshape(1, C)); b0v.append(b0[C:].reshape(1, C))
        g1.append(jnp.ones((1, C), jnp.float32))
        be1.append(jnp.zeros((1, C), jnp.float32))
        std1 = 0.05 * math.sqrt(2.0 / (L + L))   # xavier_normal_, gain=0.05
        w1.append(std1 * jax.random.normal(k2, (L, L), jnp.float32))
        b1.append(jnp.ones((L, 1), jnp.float32))  # linear1 bias init = ones
        w2.append(jax.random.normal(k3, (C, D), jnp.float32) / math.sqrt(C))
        b2.append(0.01 * jax.random.normal(k4, (1, D), jnp.float32))
    stack = lambda xs, dt: jnp.stack(xs, axis=0).astype(dt)
    return dict(
        g0=stack(g0, jnp.float32), be0=stack(be0, jnp.float32),
        w0u=stack(w0u, jnp.bfloat16), b0u=stack(b0u, jnp.float32),
        w0v=stack(w0v, jnp.bfloat16), b0v=stack(b0v, jnp.float32),
        g1=stack(g1, jnp.float32), be1=stack(be1, jnp.float32),
        w1=stack(w1, jnp.bfloat16), b1=stack(b1, jnp.float32),
        w2=stack(w2, jnp.bfloat16), b2=stack(b2, jnp.float32))


def gmlp_stack_ref(x, params):
    """Pure-JAX f32 reference (mirrors the PyTorch forward, exact erf GELU)."""
    n_layers = params["w1"].shape[0]
    f32 = lambda a: a.astype(jnp.float32)
    out = x.astype(jnp.float32)
    for i in range(n_layers):
        xin = out
        mu = xin.mean(-1, keepdims=True)
        var = ((xin - mu) ** 2).mean(-1, keepdims=True)
        xn = (xin - mu) / jnp.sqrt(var + _EPS)
        xn = xn * params["g0"][i] + params["be0"][i]
        u = jax.nn.gelu(xn @ f32(params["w0u"][i]) + params["b0u"][i],
                        approximate=False)
        v = jax.nn.gelu(xn @ f32(params["w0v"][i]) + params["b0v"][i],
                        approximate=False)
        vmu = v.mean(-1, keepdims=True)
        vvar = ((v - vmu) ** 2).mean(-1, keepdims=True)
        vn = (v - vmu) / jnp.sqrt(vvar + _EPS)
        vn = vn * params["g1"][i] + params["be1"][i]
        v_sg = jnp.einsum("lm,bmc->blc", f32(params["w1"][i]), vn) \
            + params["b1"][i]
        out = (u * v_sg) @ f32(params["w2"][i]) + params["b2"][i] + xin
    return out


if __name__ == "__main__":
    # batch, seq_len (query_len), seq_dim, hidden_dim
    B, L, D, H, N_LAYERS = 2, 8, 16, 32, 2
    key = jax.random.PRNGKey(0)
    kx, kp = jax.random.split(key)
    x = jax.random.normal(kx, (B, L, D), jnp.float32)
    params = init_params(kp, N_LAYERS, L, D, H)

    ref = gmlp_stack_ref(x, params)

    # Exercise both kernel code paths: TB > 1 (bf16 repack scratch, 1 batch
    # tile) and TB == 1 (repack skipped, 2 batch tiles / megacore-splittable).
    for tb in (2, 1):
        out = jax.block_until_ready(gmlp_stack_forward(x, params, batch_tile=tb))
        assert out.shape == (B, L, D) and out.dtype == jnp.float32
        max_err = float(jnp.max(jnp.abs(out - ref)))
        # bf16 matmul operands + tanh-approx GELU vs exact-f32 reference.
        assert jnp.allclose(out, ref, rtol=5e-2, atol=5e-2), (tb, max_err)

    print("KERNEL_OK")
</pallas_src>

<mosaic_0001>
module attributes {stable_mosaic.version = 11 : i64} {
  func.func @kernel(%arg0: i32, %arg1: i32, %arg2: memref<2x8x16xf32, #tpu.memory_space<vmem>>, %arg3: memref<1x8x16xf32, #tpu.memory_space<vmem>>, %arg4: memref<1x8x1xf32, #tpu.memory_space<vmem>>, %arg5: memref<1x16x16xbf16, #tpu.memory_space<vmem>>, %arg6: memref<1x16x16xbf16, #tpu.memory_space<vmem>>, %arg7: memref<1x8x8xbf16, #tpu.memory_space<vmem>>, %arg8: memref<1x16x16xbf16, #tpu.memory_space<vmem>>, %arg9: memref<2x8x16xf32, #tpu.memory_space<vmem>>, %arg10: memref<16x16xf32, #tpu.memory_space<vmem>>, %arg11: memref<8x32xbf16, #tpu.memory_space<vmem>>) attributes {dimension_semantics = [#tpu.dimension_semantics<parallel>, #tpu.dimension_semantics<arbitrary>], iteration_bounds = array<i64: 1, 2>, scalar_prefetch = 0 : i64, scratch_operands = 2 : i64, tpu.core_type = #tpu.core_type<tc>, window_params = [{transform_indices = @transform_0, window_bounds = array<i64: 2, 8, 16>}, {transform_indices = @transform_1, window_bounds = array<i64: 1, 8, 16>}, {transform_indices = @transform_2, window_bounds = array<i64: 1, 8, 1>}, {transform_indices = @transform_3, window_bounds = array<i64: 1, 16, 16>}, {transform_indices = @transform_4, window_bounds = array<i64: 1, 16, 16>}, {transform_indices = @transform_5, window_bounds = array<i64: 1, 8, 8>}, {transform_indices = @transform_6, window_bounds = array<i64: 1, 16, 16>}, {transform_indices = @transform_7, window_bounds = array<i64: 2, 8, 16>}]} {
    %c0_i32 = arith.constant 0 : i32
    %0 = arith.cmpi eq, %arg1, %c0_i32 : i32
    %1 = arith.extui %0 : i1 to i32
    %c0_i32_0 = arith.constant 0 : i32
    %2 = arith.cmpi ne, %1, %c0_i32_0 : i32
    scf.if %2 {
      %c0_69 = arith.constant 0 : index
      %c0_70 = arith.constant 0 : index
      %c0_71 = arith.constant 0 : index
      %147 = vector.load %arg2[%c0_69, %c0_70, %c0_71] : memref<2x8x16xf32, #tpu.memory_space<vmem>>, vector<2x8x16xf32>
      %148 = vector.shape_cast %147 : vector<2x8x16xf32> to vector<16x16xf32>
      %c0_72 = arith.constant 0 : index
      %c0_73 = arith.constant 0 : index
      %149 = vector.load %arg10[%c0_72, %c0_73] : memref<16x16xf32, #tpu.memory_space<vmem>>, vector<16x16xf32>
      tpu.vector_store %arg10[%c0_72, %c0_73], %148 {strides = array<i32>} : memref<16x16xf32, #tpu.memory_space<vmem>>, vector<16x16xf32>,
    } else {
    }
    %c0 = arith.constant 0 : index
    %c0_1 = arith.constant 0 : index
    %3 = vector.load %arg10[%c0, %c0_1] : memref<16x16xf32, #tpu.memory_space<vmem>>, vector<16x16xf32>
    %c0_2 = arith.constant 0 : index
    %c0_3 = arith.constant 0 : index
    %c0_4 = arith.constant 0 : index
    %4 = vector.load %arg3[%c0_2, %c0_3, %c0_4] : memref<1x8x16xf32, #tpu.memory_space<vmem>>, vector<1x1x16xf32>
    %5 = vector.shape_cast %4 : vector<1x1x16xf32> to vector<1x16xf32>
    %c0_5 = arith.constant 0 : index
    %c1 = arith.constant 1 : index
    %c0_6 = arith.constant 0 : index
    %6 = vector.load %arg3[%c0_5, %c1, %c0_6] : memref<1x8x16xf32, #tpu.memory_space<vmem>>, vector<1x1x16xf32>
    %7 = vector.shape_cast %6 : vector<1x1x16xf32> to vector<1x16xf32>
    %c0_7 = arith.constant 0 : index
    %c2 = arith.constant 2 : index
    %c0_8 = arith.constant 0 : index
    %8 = vector.load %arg3[%c0_7, %c2, %c0_8] : memref<1x8x16xf32, #tpu.memory_space<vmem>>, vector<1x1x16xf32>
    %9 = vector.shape_cast %8 : vector<1x1x16xf32> to vector<1x16xf32>
    %c0_9 = arith.constant 0 : index
    %c3 = arith.constant 3 : index
    %c0_10 = arith.constant 0 : index
    %10 = vector.load %arg3[%c0_9, %c3, %c0_10] : memref<1x8x16xf32, #tpu.memory_space<vmem>>, vector<1x1x16xf32>
    %11 = vector.shape_cast %10 : vector<1x1x16xf32> to vector<1x16xf32>
    %c0_11 = arith.constant 0 : index
    %c4 = arith.constant 4 : index
    %c0_12 = arith.constant 0 : index
    %12 = vector.load %arg3[%c0_11, %c4, %c0_12] : memref<1x8x16xf32, #tpu.memory_space<vmem>>, vector<1x1x16xf32>
    %13 = vector.shape_cast %12 : vector<1x1x16xf32> to vector<1x16xf32>
    %c0_13 = arith.constant 0 : index
    %c5 = arith.constant 5 : index
    %c0_14 = arith.constant 0 : index
    %14 = vector.load %arg3[%c0_13, %c5, %c0_14] : memref<1x8x16xf32, #tpu.memory_space<vmem>>, vector<1x1x16xf32>
    %15 = vector.shape_cast %14 : vector<1x1x16xf32> to vector<1x16xf32>
    %c0_15 = arith.constant 0 : index
    %c6 = arith.constant 6 : index
    %c0_16 = arith.constant 0 : index
    %16 = vector.load %arg3[%c0_15, %c6, %c0_16] : memref<1x8x16xf32, #tpu.memory_space<vmem>>, vector<1x1x16xf32>
    %17 = vector.shape_cast %16 : vector<1x1x16xf32> to vector<1x16xf32>
    %cst = arith.constant dense<0.000000e+00> : vector<16xf32>
    %18 = vector.multi_reduction <add>, %3, %cst [1] : vector<16x16xf32> to vector<16xf32>
    %19 = vector.shape_cast %18 : vector<16xf32> to vector<16x1xf32>
    %cst_17 = arith.constant 1.600000e+01 : f32
    %20 = vector.broadcast %cst_17 : f32 to vector<16x1xf32>
    %21 = arith.divf %19, %20 : vector<16x1xf32>
    %22 = vector.broadcast %21 : vector<16x1xf32> to vector<16x16xf32>
    %23 = arith.subf %3, %22 : vector<16x16xf32>
    %24 = arith.mulf %23, %23 : vector<16x16xf32>
    %cst_18 = arith.constant dense<0.000000e+00> : vector<16xf32>
    %25 = vector.multi_reduction <add>, %24, %cst_18 [1] : vector<16x16xf32> to vector<16xf32>
    %26 = vector.shape_cast %25 : vector<16xf32> to vector<16x1xf32>
    %cst_19 = arith.constant 1.600000e+01 : f32
    %27 = vector.broadcast %cst_19 : f32 to vector<16x1xf32>
    %28 = arith.divf %26, %27 : vector<16x1xf32>
    %29 = vector.broadcast %21 : vector<16x1xf32> to vector<16x16xf32>
    %30 = arith.subf %3, %29 : vector<16x16xf32>
    %cst_20 = arith.constant 9.99999974E-6 : f32
    %31 = vector.broadcast %cst_20 : f32 to vector<16x1xf32>
    %32 = arith.addf %28, %31 : vector<16x1xf32>
    %33 = math.rsqrt %32 : vector<16x1xf32>
    %34 = vector.broadcast %33 : vector<16x1xf32> to vector<16x16xf32>
    %35 = arith.mulf %30, %34 : vector<16x16xf32>
    %36 = vector.broadcast %5 : vector<1x16xf32> to vector<16x16xf32>
    %37 = arith.mulf %35, %36 : vector<16x16xf32>
    %38 = vector.broadcast %7 : vector<1x16xf32> to vector<16x16xf32>
    %39 = arith.addf %37, %38 : vector<16x16xf32>
    %40 = arith.truncf %39 : vector<16x16xf32> to vector<16x16xbf16>
    %c0_21 = arith.constant 0 : index
    %c0_22 = arith.constant 0 : index
    %c0_23 = arith.constant 0 : index
    %41 = vector.load %arg6[%c0_21, %c0_22, %c0_23] : memref<1x16x16xbf16, #tpu.memory_space<vmem>>, vector<1x16x16xbf16>
    %42 = vector.shape_cast %41 : vector<1x16x16xbf16> to vector<16x16xbf16>
    %cst_24 = arith.constant dense<0.000000e+00> : vector<16x16xf32>
    %43 = tpu.matmul %40, %42, %cst_24 {dimension_numbers = #tpu.dot_dimension_numbers<[1], [0], [0], [1], [0, 0, 1, 1], [], []>} : vector<16x16xbf16>, vector<16x16xbf16>, vector<16x16xf32> -> vector<16x16xf32>
    %44 = vector.broadcast %11 : vector<1x16xf32> to vector<16x16xf32>
    %45 = arith.addf %43, %44 : vector<16x16xf32>
    %cst_25 = arith.constant 5.000000e-01 : f32
    %46 = vector.broadcast %cst_25 : f32 to vector<16x16xf32>
    %47 = arith.mulf %46, %45 : vector<16x16xf32>
    %48 = arith.mulf %45, %45 : vector<16x16xf32>
    %49 = arith.mulf %48, %45 : vector<16x16xf32>
    %cst_26 = arith.constant 4.471500e-02 : f32
    %50 = vector.broadcast %cst_26 : f32 to vector<16x16xf32>
    %51 = arith.mulf %50, %49 : vector<16x16xf32>
    %52 = arith.addf %45, %51 : vector<16x16xf32>
    %cst_27 = arith.constant 0.797884583 : f32
    %53 = vector.broadcast %cst_27 : f32 to vector<16x16xf32>
    %54 = arith.mulf %53, %52 : vector<16x16xf32>
    %55 = math.tanh %54 : vector<16x16xf32>
    %cst_28 = arith.constant 1.000000e+00 : f32
    %56 = vector.broadcast %cst_28 : f32 to vector<16x16xf32>
    %57 = arith.addf %56, %55 : vector<16x16xf32>
    %58 = arith.mulf %47, %57 : vector<16x16xf32>
    %cst_29 = arith.constant dense<0.000000e+00> : vector<16xf32>
    %59 = vector.multi_reduction <add>, %58, %cst_29 [1] : vector<16x16xf32> to vector<16xf32>
    %60 = vector.shape_cast %59 : vector<16xf32> to vector<16x1xf32>
    %cst_30 = arith.constant 1.600000e+01 : f32
    %61 = vector.broadcast %cst_30 : f32 to vector<16x1xf32>
    %62 = arith.divf %60, %61 : vector<16x1xf32>
    %63 = vector.broadcast %62 : vector<16x1xf32> to vector<16x16xf32>
    %64 = arith.subf %58, %63 : vector<16x16xf32>
    %65 = arith.mulf %64, %64 : vector<16x16xf32>
    %cst_31 = arith.constant dense<0.000000e+00> : vector<16xf32>
    %66 = vector.multi_reduction <add>, %65, %cst_31 [1] : vector<16x16xf32> to vector<16xf32>
    %67 = vector.shape_cast %66 : vector<16xf32> to vector<16x1xf32>
    %cst_32 = arith.constant 1.600000e+01 : f32
    %68 = vector.broadcast %cst_32 : f32 to vector<16x1xf32>
    %69 = arith.divf %67, %68 : vector<16x1xf32>
    %70 = vector.broadcast %62 : vector<16x1xf32> to vector<16x16xf32>
    %71 = arith.subf %58, %70 : vector<16x16xf32>
    %cst_33 = arith.constant 9.99999974E-6 : f32
    %72 = vector.broadcast %cst_33 : f32 to vector<16x1xf32>
    %73 = arith.addf %69, %72 : vector<16x1xf32>
    %74 = math.rsqrt %73 : vector<16x1xf32>
    %75 = vector.broadcast %74 : vector<16x1xf32> to vector<16x16xf32>
    %76 = arith.mulf %71, %75 : vector<16x16xf32>
    %77 = vector.broadcast %13 : vector<1x16xf32> to vector<16x16xf32>
    %78 = arith.mulf %76, %77 : vector<16x16xf32>
    %79 = vector.broadcast %15 : vector<1x16xf32> to vector<16x16xf32>
    %80 = arith.addf %78, %79 : vector<16x16xf32>
    %81 = vector.extract_strided_slice %80 {offsets = [0, 0], sizes = [8, 16], strides = [1, 1]} : vector<16x16xf32> to vector<8x16xf32>
    %82 = arith.truncf %81 : vector<8x16xf32> to vector<8x16xbf16>
    %c0_34 = arith.constant 0 : index
    %c0_35 = arith.constant 0 : index
    %83 = vector.load %arg11[%c0_34, %c0_35] : memref<8x32xbf16, #tpu.memory_space<vmem>>, vector<8x16xbf16>
    tpu.vector_store %arg11[%c0_34, %c0_35], %82 {strides = array<i32>} : memref<8x32xbf16, #tpu.memory_space<vmem>>, vector<8x16xbf16>,
    %84 = vector.extract_strided_slice %80 {offsets = [8, 0], sizes = [8, 16], strides = [1, 1]} : vector<16x16xf32> to vector<8x16xf32>
    %85 = arith.truncf %84 : vector<8x16xf32> to vector<8x16xbf16>
    %c0_36 = arith.constant 0 : index
    %c16 = arith.constant 16 : index
    %86 = vector.load %arg11[%c0_36, %c16] : memref<8x32xbf16, #tpu.memory_space<vmem>>, vector<8x16xbf16>
    tpu.vector_store %arg11[%c0_36, %c16], %85 {strides = array<i32>} : memref<8x32xbf16, #tpu.memory_space<vmem>>, vector<8x16xbf16>,
    %c0_37 = arith.constant 0 : index
    %c0_38 = arith.constant 0 : index
    %87 = vector.load %arg11[%c0_37, %c0_38] : memref<8x32xbf16, #tpu.memory_space<vmem>>, vector<8x32xbf16>
    %c0_39 = arith.constant 0 : index
    %c0_40 = arith.constant 0 : index
    %c0_41 = arith.constant 0 : index
    %88 = vector.load %arg7[%c0_39, %c0_40, %c0_41] : memref<1x8x8xbf16, #tpu.memory_space<vmem>>, vector<1x8x8xbf16>
    %89 = vector.shape_cast %88 : vector<1x8x8xbf16> to vector<8x8xbf16>
    %cst_42 = arith.constant dense<0.000000e+00> : vector<8x32xf32>
    %90 = tpu.matmul %89, %87, %cst_42 {dimension_numbers = #tpu.dot_dimension_numbers<[1], [0], [0], [1], [0, 0, 1, 1], [], []>} : vector<8x8xbf16>, vector<8x32xbf16>, vector<8x32xf32> -> vector<8x32xf32>
    %c0_43 = arith.constant 0 : index
    %c0_44 = arith.constant 0 : index
    %c0_45 = arith.constant 0 : index
    %91 = vector.load %arg4[%c0_43, %c0_44, %c0_45] : memref<1x8x1xf32, #tpu.memory_space<vmem>>, vector<1x8x1xf32>
    %92 = vector.shape_cast %91 : vector<1x8x1xf32> to vector<8x1xf32>
    %93 = vector.broadcast %92 : vector<8x1xf32> to vector<8x32xf32>
    %94 = arith.addf %90, %93 : vector<8x32xf32>
    %c0_46 = arith.constant 0 : index
    %c0_47 = arith.constant 0 : index
    %c0_48 = arith.constant 0 : index
    %95 = vector.load %arg5[%c0_46, %c0_47, %c0_48] : memref<1x16x16xbf16, #tpu.memory_space<vmem>>, vector<1x16x16xbf16>
    %96 = vector.shape_cast %95 : vector<1x16x16xbf16> to vector<16x16xbf16>
    %cst_49 = arith.constant dense<0.000000e+00> : vector<16x16xf32>
    %97 = tpu.matmul %40, %96, %cst_49 {dimension_numbers = #tpu.dot_dimension_numbers<[1], [0], [0], [1], [0, 0, 1, 1], [], []>} : vector<16x16xbf16>, vector<16x16xbf16>, vector<16x16xf32> -> vector<16x16xf32>
    %98 = vector.broadcast %9 : vector<1x16xf32> to vector<16x16xf32>
    %99 = arith.addf %97, %98 : vector<16x16xf32>
    %cst_50 = arith.constant 5.000000e-01 : f32
    %100 = vector.broadcast %cst_50 : f32 to vector<16x16xf32>
    %101 = arith.mulf %100, %99 : vector<16x16xf32>
    %102 = arith.mulf %99, %99 : vector<16x16xf32>
    %103 = arith.mulf %102, %99 : vector<16x16xf32>
    %cst_51 = arith.constant 4.471500e-02 : f32
    %104 = vector.broadcast %cst_51 : f32 to vector<16x16xf32>
    %105 = arith.mulf %104, %103 : vector<16x16xf32>
    %106 = arith.addf %99, %105 : vector<16x16xf32>
    %cst_52 = arith.constant 0.797884583 : f32
    %107 = vector.broadcast %cst_52 : f32 to vector<16x16xf32>
    %108 = arith.mulf %107, %106 : vector<16x16xf32>
    %109 = math.tanh %108 : vector<16x16xf32>
    %cst_53 = arith.constant 1.000000e+00 : f32
    %110 = vector.broadcast %cst_53 : f32 to vector<16x16xf32>
    %111 = arith.addf %110, %109 : vector<16x16xf32>
    %112 = arith.mulf %101, %111 : vector<16x16xf32>
    %113 = vector.extract_strided_slice %112 {offsets = [0, 0], sizes = [8, 16], strides = [1, 1]} : vector<16x16xf32> to vector<8x16xf32>
    %114 = vector.extract_strided_slice %94 {offsets = [0, 0], sizes = [8, 16], strides = [1, 1]} : vector<8x32xf32> to vector<8x16xf32>
    %115 = arith.mulf %113, %114 : vector<8x16xf32>
    %116 = arith.truncf %115 : vector<8x16xf32> to vector<8x16xbf16>
    %c0_54 = arith.constant 0 : index
    %c0_55 = arith.constant 0 : index
    %c0_56 = arith.constant 0 : index
    %117 = vector.load %arg8[%c0_54, %c0_55, %c0_56] : memref<1x16x16xbf16, #tpu.memory_space<vmem>>, vector<1x16x16xbf16>
    %118 = vector.shape_cast %117 : vector<1x16x16xbf16> to vector<16x16xbf16>
    %cst_57 = arith.constant dense<0.000000e+00> : vector<8x16xf32>
    %119 = tpu.matmul %116, %118, %cst_57 {dimension_numbers = #tpu.dot_dimension_numbers<[1], [0], [0], [1], [0, 0, 1, 1], [], []>} : vector<8x16xbf16>, vector<16x16xbf16>, vector<8x16xf32> -> vector<8x16xf32>
    %120 = vector.broadcast %17 : vector<1x16xf32> to vector<8x16xf32>
    %121 = arith.addf %119, %120 : vector<8x16xf32>
    %122 = vector.extract_strided_slice %3 {offsets = [0, 0], sizes = [8, 16], strides = [1, 1]} : vector<16x16xf32> to vector<8x16xf32>
    %123 = arith.addf %121, %122 : vector<8x16xf32>
    %c1_i32 = arith.constant 1 : i32
    %124 = arith.cmpi ne, %arg1, %c1_i32 : i32
    %125 = arith.extui %124 : i1 to i32
    %c0_i32_58 = arith.constant 0 : i32
    %126 = arith.cmpi ne, %125, %c0_i32_58 : i32
    scf.if %126 {
      %c0_69 = arith.constant 0 : index
      %c0_70 = arith.constant 0 : index
      %147 = vector.load %arg10[%c0_69, %c0_70] : memref<16x16xf32, #tpu.memory_space<vmem>>, vector<8x16xf32>
      tpu.vector_store %arg10[%c0_69, %c0_70], %123 {strides = array<i32>} : memref<16x16xf32, #tpu.memory_space<vmem>>, vector<8x16xf32>,
    } else {
    }
    %c1_i32_59 = arith.constant 1 : i32
    %127 = arith.cmpi eq, %arg1, %c1_i32_59 : i32
    %128 = arith.extui %127 : i1 to i32
    %c0_i32_60 = arith.constant 0 : i32
    %129 = arith.cmpi ne, %128, %c0_i32_60 : i32
    scf.if %129 {
      %c0_69 = arith.constant 0 : index
      %c0_70 = arith.constant 0 : index
      %c0_71 = arith.constant 0 : index
      %147 = vector.load %arg9[%c0_69, %c0_70, %c0_71] : memref<2x8x16xf32, #tpu.memory_space<vmem>>, vector<1x8x16xf32>
      %148 = vector.shape_cast %147 : vector<1x8x16xf32> to vector<8x16xf32>
      %149 = vector.shape_cast %123 : vector<8x16xf32> to vector<1x8x16xf32>
      tpu.vector_store %arg9[%c0_69, %c0_70, %c0_71], %149 {strides = array<i32>} : memref<2x8x16xf32, #tpu.memory_space<vmem>>, vector<1x8x16xf32>,
    } else {
    }
    %130 = vector.extract_strided_slice %112 {offsets = [8, 0], sizes = [8, 16], strides = [1, 1]} : vector<16x16xf32> to vector<8x16xf32>
    %131 = vector.extract_strided_slice %94 {offsets = [0, 16], sizes = [8, 16], strides = [1, 1]} : vector<8x32xf32> to vector<8x16xf32>
    %132 = arith.mulf %130, %131 : vector<8x16xf32>
    %133 = arith.truncf %132 : vector<8x16xf32> to vector<8x16xbf16>
    %c0_61 = arith.constant 0 : index
    %c0_62 = arith.constant 0 : index
    %c0_63 = arith.constant 0 : index
    %134 = vector.load %arg8[%c0_61, %c0_62, %c0_63] : memref<1x16x16xbf16, #tpu.memory_space<vmem>>, vector<1x16x16xbf16>
    %135 = vector.shape_cast %134 : vector<1x16x16xbf16> to vector<16x16xbf16>
    %cst_64 = arith.constant dense<0.000000e+00> : vector<8x16xf32>
    %136 = tpu.matmul %133, %135, %cst_64 {dimension_numbers = #tpu.dot_dimension_numbers<[1], [0], [0], [1], [0, 0, 1, 1], [], []>} : vector<8x16xbf16>, vector<16x16xbf16>, vector<8x16xf32> -> vector<8x16xf32>
    %137 = vector.broadcast %17 : vector<1x16xf32> to vector<8x16xf32>
    %138 = arith.addf %136, %137 : vector<8x16xf32>
    %139 = vector.extract_strided_slice %3 {offsets = [8, 0], sizes = [8, 16], strides = [1, 1]} : vector<16x16xf32> to vector<8x16xf32>
    %140 = arith.addf %138, %139 : vector<8x16xf32>
    %c1_i32_65 = arith.constant 1 : i32
    %141 = arith.cmpi ne, %arg1, %c1_i32_65 : i32
    %142 = arith.extui %141 : i1 to i32
    %c0_i32_66 = arith.constant 0 : i32
    %143 = arith.cmpi ne, %142, %c0_i32_66 : i32
    scf.if %143 {
      %c8 = arith.constant 8 : index
      %c0_69 = arith.constant 0 : index
      %147 = vector.load %arg10[%c8, %c0_69] : memref<16x16xf32, #tpu.memory_space<vmem>>, vector<8x16xf32>
      tpu.vector_store %arg10[%c8, %c0_69], %140 {strides = array<i32>} : memref<16x16xf32, #tpu.memory_space<vmem>>, vector<8x16xf32>,
    } else {
    }
    %c1_i32_67 = arith.constant 1 : i32
    %144 = arith.cmpi eq, %arg1, %c1_i32_67 : i32
    %145 = arith.extui %144 : i1 to i32
    %c0_i32_68 = arith.constant 0 : i32
    %146 = arith.cmpi ne, %145, %c0_i32_68 : i32
    scf.if %146 {
      %c1_69 = arith.constant 1 : index
      %c0_70 = arith.constant 0 : index
      %c0_71 = arith.constant 0 : index
      %147 = vector.load %arg9[%c1_69, %c0_70, %c0_71] : memref<2x8x16xf32, #tpu.memory_space<vmem>>, vector<1x8x16xf32>
      %148 = vector.shape_cast %147 : vector<1x8x16xf32> to vector<8x16xf32>
      %149 = vector.shape_cast %140 : vector<8x16xf32> to vector<1x8x16xf32>
      tpu.vector_store %arg9[%c1_69, %c0_70, %c0_71], %149 {strides = array<i32>} : memref<2x8x16xf32, #tpu.memory_space<vmem>>, vector<1x8x16xf32>,
    } else {
    }
    return
  }
  func.func @transform_0(%arg0: i32, %arg1: i32) -> (i32, i32, i32) {
    %c0_i32 = arith.constant 0 : i32
    %c0_i32_0 = arith.constant 0 : i32
    %c0_i32_1 = arith.constant 0 : i32
    return %arg0, %c0_i32, %c0_i32_0 : i32, i32, i32
  }
  func.func @transform_1(%arg0: i32, %arg1: i32) -> (i32, i32, i32) {
    %c0_i32 = arith.constant 0 : i32
    %c0_i32_0 = arith.constant 0 : i32
    %c0_i32_1 = arith.constant 0 : i32
    return %arg1, %c0_i32, %c0_i32_0 : i32, i32, i32
  }
  func.func @transform_2(%arg0: i32, %arg1: i32) -> (i32, i32, i32) {
    %c0_i32 = arith.constant 0 : i32
    %c0_i32_0 = arith.constant 0 : i32
    %c0_i32_1 = arith.constant 0 : i32
    return %arg1, %c0_i32, %c0_i32_0 : i32, i32, i32
  }
  func.func @transform_3(%arg0: i32, %arg1: i32) -> (i32, i32, i32) {
    %c0_i32 = arith.constant 0 : i32
    %c0_i32_0 = arith.constant 0 : i32
    %c0_i32_1 = arith.constant 0 : i32
    return %arg1, %c0_i32, %c0_i32_0 : i32, i32, i32
  }
  func.func @transform_4(%arg0: i32, %arg1: i32) -> (i32, i32, i32) {
    %c0_i32 = arith.constant 0 : i32
    %c0_i32_0 = arith.constant 0 : i32
    %c0_i32_1 = arith.constant 0 : i32
    return %arg1, %c0_i32, %c0_i32_0 : i32, i32, i32
  }
  func.func @transform_5(%arg0: i32, %arg1: i32) -> (i32, i32, i32) {
    %c0_i32 = arith.constant 0 : i32
    %c0_i32_0 = arith.constant 0 : i32
    %c0_i32_1 = arith.constant 0 : i32
    return %arg1, %c0_i32, %c0_i32_0 : i32, i32, i32
  }
  func.func @transform_6(%arg0: i32, %arg1: i32) -> (i32, i32, i32) {
    %c0_i32 = arith.constant 0 : i32
    %c0_i32_0 = arith.constant 0 : i32
    %c0_i32_1 = arith.constant 0 : i32
    return %arg1, %c0_i32, %c0_i32_0 : i32, i32, i32
  }
  func.func @transform_7(%arg0: i32, %arg1: i32) -> (i32, i32, i32) {
    %c0_i32 = arith.constant 0 : i32
    %c0_i32_0 = arith.constant 0 : i32
    %c0_i32_1 = arith.constant 0 : i32
    return %arg0, %c0_i32, %c0_i32_0 : i32, i32, i32
  }
}

</mosaic_0001>

<llo_original>
// kernel: tpu_custom_call.1
$region0: #{tpu_custom_call.1}
  #allocation0 [shape = 'u32[]', space=smem, size = 0x4, offset = 0x4, fixed_abs, tag = 'smem constant byte address 0x4 - core index']
  #allocation1 [shape = 'u32[144,128]{1,0:T(1,128)}', space=vmem, size = 0x12000, scoped, tag = 'internal scratch']
  #allocation2 [shape = 'f32[16,16]{1,0:T(8,128)}', space=vmem, size = 0x2000, scoped, tag = 'scratch operand']
  #allocation3 [shape = 'bf16[8,32]{1,0:T(8,128)(2,1)}', space=vmem, size = 0x800, scoped, tag = 'scratch operand']
  %s0 = inlined_call_operand.vmem [shape: f32[2,8,16], index: 0, kind: input, shape index: {}]
  %s1 = inlined_call_operand.hbm [shape: f32[2,8,16], index: 1, kind: input, shape index: {}]
  %s2 = inlined_call_operand.vmem [shape: f32[2,8,1], index: 2, kind: input, shape index: {}]
  %s3 = inlined_call_operand.hbm [shape: bf16[2,16,16], index: 3, kind: input, shape index: {}]
  %s4 = inlined_call_operand.hbm [shape: bf16[2,16,16], index: 4, kind: input, shape index: {}]
  %s5 = inlined_call_operand.vmem [shape: bf16[2,8,8], index: 5, kind: input, shape index: {}]
  %s6 = inlined_call_operand.hbm [shape: bf16[2,16,16], index: 6, kind: input, shape index: {}]
  %s7 = inlined_call_operand.hbm [shape: f32[2,8,16], index: 7, kind: output, shape index: {}]
  %s8 = sld [smem:[#allocation0]]
  $region97: #{tpu_custom_call.1} parent=0
    _
  %s10 = ssub.s32 1, %s8
  %s11 = scalar_select 0, %s10, %s8
  $region1: #{tpu_custom_call.1} parent=0
    #allocation4 [shape = 'u8[8192]{0}', space=vmem, size = 0x2000, scoped, tag = 'input window, operand 1']
    #allocation5 [shape = 's32[2]{0}', space=sflag, size = 0x8, scoped, tag = 'scoped memory for tpu_custom_call.1']
    #allocation6 [shape = 's32[2]{0}', space=sflag, size = 0x8, scoped, tag = 'scoped memory for tpu_custom_call.1']
    #allocation7 [shape = 'u8[8192]{0}', space=vmem, size = 0x2000, scoped, tag = 'input window, operand 3']
    #allocation8 [shape = 's32[2]{0}', space=sflag, size = 0x8, scoped, tag = 'scoped memory for tpu_custom_call.1']
    #allocation9 [shape = 'u8[8192]{0}', space=vmem, size = 0x2000, scoped, tag = 'input window, operand 4']
    #allocation10 [shape = 'u8[8192]{0}', space=vmem, size = 0x2000, scoped, tag = 'input window, operand 6']
    #allocation11 [shape = 's32[2]{0}', space=sflag, size = 0x8, scoped, tag = 'scoped memory for tpu_custom_call.1']
    #allocation12 [shape = 'u8[8192]{0}', space=vmem, size = 0x2000, scoped, tag = 'output window, operand 0, single buffered']
    %12 = vsyncpa [#allocation5], 0
    %s13 = scalar_lea.sflag [#allocation5], 1
    %14 = vsyncpa %s13, 0
    %15 = vsyncpa [#allocation8], 0
    %s16 = scalar_lea.sflag [#allocation8], 1
    %17 = vsyncpa %s16, 0
    %18 = vsyncpa [#allocation11], 0
    %s19 = scalar_lea.sflag [#allocation11], 1
    %20 = vsyncpa %s19, 0
    %21 = vsyncpa [#allocation6], 0
    loop: start=0, step=1, limit=4
    $region2: #{tpu_custom_call.1} parent=1 // loop_pre_header
      _
    $region3: #{tpu_custom_call.1} parent=1 // loop_header
      %s23 = sphi 0, %s27
      %p24 = scmp.ge.s32.totalorder %s23, 4
      %s30 = sphi 0, %s42
      %s31 = sphi 0, %s38
      %s32 = sphi 0, %s30
      %s33 = sphi 0, %s31
      %s34 = sphi 0, %s32
      %s35 = sphi 0, %s33
      %s45 = sphi 0, %s47
      %s48 = sphi 0, %s45
      %s49 = sphi 0, %s48
      %s65 = sphi 0, %s49
      %s71 = sphi 0, %s73
      %s74 = sphi 0, %s71
      %s75 = sphi 0, %s74
      %s91 = sphi 0, %s75
      %s97 = sphi 0, %s99
      %s100 = sphi 0, %s97
      %s101 = sphi 0, %s100
      %s117 = sphi 0, %s101
      %s123 = sphi 0, %s125
      %s126 = sphi 0, %s123
      %s127 = sphi 0, %s126
      %s143 = sphi 0, %s127
      %s149 = sphi 0, %s151
      %s152 = sphi 0, %s149
      %s153 = sphi 0, %s152
      %s169 = sphi 0, %s153
      %s175 = sphi 0, %s177
      %s178 = sphi 0, %s175
      %s179 = sphi 0, %s178
      %s195 = sphi 0, %s179
      %s201 = sphi 0, %s203
      %s204 = sphi 0, %s201
      %s205 = sphi 0, %s204
      %s221 = sphi 0, %s205
      %s227 = sphi 0, %s229
      %s230 = sphi 0, %s227
      %s231 = sphi 0, %s230
      %s247 = sphi 0, %s231
    $region4: #{tpu_custom_call.1} parent=1 // loop_header_branch
      %26 = sbr.rel (%p24) target = $region8
    $region5: #{tpu_custom_call.1} parent=1 // loop_body
      %s28 = ssub.s32 %s23, 1
      %s29 = ssub.s32 %s23, 2
      %s36 = sadd.s32 1, %s31
      %p37 = scmp.ge.s32.totalorder %s36, 2
      %s38 = scalar_select %p37, 0, %s36
      %s39 = sadd.s32 1, %s30
      %s40 = scalar_select %p37, %s39, %s30
      %p41 = scmp.ge.s32.totalorder %s40, 1
      %s42 = scalar_select %p41, 0, %s40
      %s43 = ssub.s32 %s30, %s42
      %p44 = scmp.eq.s32.totalorder %s43, 0
      %s46 = sadd.s32 %s45, 1
      %s47 = scalar_select %p44, %s45, %s46
      %p50 = pneg %p44
      %p51 = scmp.eq.s32.totalorder %s23, 1
      %p52 = por %p50, %p51
      %p53 = scmp.ne.s32.totalorder %s45, %s48
      %p54 = scmp.eq.s32.totalorder %s23, 0
      %p55 = por %p53, %p54
      %p56 = scmp.ne.s32.totalorder %s45, %s48
      %p57 = scmp.eq.s32.totalorder %s28, 1
      %p58 = por %p56, %p57
      %p59 = scmp.ne.s32.totalorder %s48, %s49
      %p60 = scmp.eq.s32.totalorder %s28, 0
      %p61 = por %p59, %p60
      %p62 = scmp.ne.s32.totalorder %s48, %s49
      %p63 = scmp.eq.s32.totalorder %s29, 1
      %p64 = por %p62, %p63
      %p66 = scmp.ne.s32.totalorder %s49, %s65
      %p67 = scmp.eq.s32.totalorder %s29, 0
      %p68 = por %p66, %p67
      %s69 = ssub.s32 %s31, %s38
      %p70 = scmp.eq.s32.totalorder %s69, 0
      %s72 = sadd.s32 %s71, 1
      %s73 = scalar_select %p70, %s71, %s72
      %p76 = pneg %p70
      %p77 = scmp.eq.s32.totalorder %s23, 1
      %p78 = por %p76, %p77
      %p79 = scmp.ne.s32.totalorder %s71, %s74
      %p80 = scmp.eq.s32.totalorder %s23, 0
      %p81 = por %p79, %p80
      %p82 = scmp.ne.s32.totalorder %s71, %s74
      %p83 = scmp.eq.s32.totalorder %s28, 1
      %p84 = por %p82, %p83
      %p85 = scmp.ne.s32.totalorder %s74, %s75
      %p86 = scmp.eq.s32.totalorder %s28, 0
      %p87 = por %p85, %p86
      %p88 = scmp.ne.s32.totalorder %s74, %s75
      %p89 = scmp.eq.s32.totalorder %s29, 1
      %p90 = por %p88, %p89
      %p92 = scmp.ne.s32.totalorder %s75, %s91
      %p93 = scmp.eq.s32.totalorder %s29, 0
      %p94 = por %p92, %p93
      %s95 = ssub.s32 %s31, %s38
      %p96 = scmp.eq.s32.totalorder %s95, 0
      %s98 = sadd.s32 %s97, 1
      %s99 = scalar_select %p96, %s97, %s98
      %p102 = pneg %p96
      %p103 = scmp.eq.s32.totalorder %s23, 1
      %p104 = por %p102, %p103
      %p105 = scmp.ne.s32.totalorder %s97, %s100
      %p106 = scmp.eq.s32.totalorder %s23, 0
      %p107 = por %p105, %p106
      %p108 = scmp.ne.s32.totalorder %s97, %s100
      %p109 = scmp.eq.s32.totalorder %s28, 1
      %p110 = por %p108, %p109
      %p111 = scmp.ne.s32.totalorder %s100, %s101
      %p112 = scmp.eq.s32.totalorder %s28, 0
      %p113 = por %p111, %p112
      %p114 = scmp.ne.s32.totalorder %s100, %s101
      %p115 = scmp.eq.s32.totalorder %s29, 1
      %p116 = por %p114, %p115
      %p118 = scmp.ne.s32.totalorder %s101, %s117
      %p119 = scmp.eq.s32.totalorder %s29, 0
      %p120 = por %p118, %p119
      %s121 = ssub.s32 %s31, %s38
      %p122 = scmp.eq.s32.totalorder %s121, 0
      %s124 = sadd.s32 %s123, 1
      %s125 = scalar_select %p122, %s123, %s124
      %p128 = pneg %p122
      %p129 = scmp.eq.s32.totalorder %s23, 1
      %p130 = por %p128, %p129
      %p131 = scmp.ne.s32.totalorder %s123, %s126
      %p132 = scmp.eq.s32.totalorder %s23, 0
      %p133 = por %p131, %p132
      %p134 = scmp.ne.s32.totalorder %s123, %s126
      %p135 = scmp.eq.s32.totalorder %s28, 1
      %p136 = por %p134, %p135
      %p137 = scmp.ne.s32.totalorder %s126, %s127
      %p138 = scmp.eq.s32.totalorder %s28, 0
      %p139 = por %p137, %p138
      %p140 = scmp.ne.s32.totalorder %s126, %s127
      %p141 = scmp.eq.s32.totalorder %s29, 1
      %p142 = por %p140, %p141
      %p144 = scmp.ne.s32.totalorder %s127, %s143
      %p145 = scmp.eq.s32.totalorder %s29, 0
      %p146 = por %p144, %p145
      %s147 = ssub.s32 %s31, %s38
      %p148 = scmp.eq.s32.totalorder %s147, 0
      %s150 = sadd.s32 %s149, 1
      %s151 = scalar_select %p148, %s149, %s150
      %p154 = pneg %p148
      %p155 = scmp.eq.s32.totalorder %s23, 1
      %p156 = por %p154, %p155
      %p157 = scmp.ne.s32.totalorder %s149, %s152
      %p158 = scmp.eq.s32.totalorder %s23, 0
      %p159 = por %p157, %p158
      %p160 = scmp.ne.s32.totalorder %s149, %s152
      %p161 = scmp.eq.s32.totalorder %s28, 1
      %p162 = por %p160, %p161
      %p163 = scmp.ne.s32.totalorder %s152, %s153
      %p164 = scmp.eq.s32.totalorder %s28, 0
      %p165 = por %p163, %p164
      %p166 = scmp.ne.s32.totalorder %s152, %s153
      %p167 = scmp.eq.s32.totalorder %s29, 1
      %p168 = por %p166, %p167
      %p170 = scmp.ne.s32.totalorder %s153, %s169
      %p171 = scmp.eq.s32.totalorder %s29, 0
      %p172 = por %p170, %p171
      %s173 = ssub.s32 %s31, %s38
      %p174 = scmp.eq.s32.totalorder %s173, 0
      %s176 = sadd.s32 %s175, 1
      %s177 = scalar_select %p174, %s175, %s176
      %p180 = pneg %p174
      %p181 = scmp.eq.s32.totalorder %s23, 1
      %p182 = por %p180, %p181
      %p183 = scmp.ne.s32.totalorder %s175, %s178
      %p184 = scmp.eq.s32.totalorder %s23, 0
      %p185 = por %p183, %p184
      %p186 = scmp.ne.s32.totalorder %s175, %s178
      %p187 = scmp.eq.s32.totalorder %s28, 1
      %p188 = por %p186, %p187
      %p189 = scmp.ne.s32.totalorder %s178, %s179
      %p190 = scmp.eq.s32.totalorder %s28, 0
      %p191 = por %p189, %p190
      %p192 = scmp.ne.s32.totalorder %s178, %s179
      %p193 = scmp.eq.s32.totalorder %s29, 1
      %p194 = por %p192, %p193
      %p196 = scmp.ne.s32.totalorder %s179, %s195
      %p197 = scmp.eq.s32.totalorder %s29, 0
      %p198 = por %p196, %p197
      %s199 = ssub.s32 %s31, %s38
      %p200 = scmp.eq.s32.totalorder %s199, 0
      %s202 = sadd.s32 %s201, 1
      %s203 = scalar_select %p200, %s201, %s202
      %p206 = pneg %p200
      %p207 = scmp.eq.s32.totalorder %s23, 1
      %p208 = por %p206, %p207
      %p209 = scmp.ne.s32.totalorder %s201, %s204
      %p210 = scmp.eq.s32.totalorder %s23, 0
      %p211 = por %p209, %p210
      %p212 = scmp.ne.s32.totalorder %s201, %s204
      %p213 = scmp.eq.s32.totalorder %s28, 1
      %p214 = por %p212, %p213
      %p215 = scmp.ne.s32.totalorder %s204, %s205
      %p216 = scmp.eq.s32.totalorder %s28, 0
      %p217 = por %p215, %p216
      %p218 = scmp.ne.s32.totalorder %s204, %s205
      %p219 = scmp.eq.s32.totalorder %s29, 1
      %p220 = por %p218, %p219
      %p222 = scmp.ne.s32.totalorder %s205, %s221
      %p223 = scmp.eq.s32.totalorder %s29, 0
      %p224 = por %p222, %p223
      %s225 = ssub.s32 %s30, %s42
      %p226 = scmp.eq.s32.totalorder %s225, 0
      %s228 = sadd.s32 %s227, 1
      %s229 = scalar_select %p226, %s227, %s228
      %p232 = pneg %p226
      %p233 = scmp.eq.s32.totalorder %s23, 1
      %p234 = por %p232, %p233
      %p235 = scmp.ne.s32.totalorder %s227, %s230
      %p236 = scmp.eq.s32.totalorder %s23, 0
      %p237 = por %p235, %p236
      %p238 = scmp.ne.s32.totalorder %s227, %s230
      %p239 = scmp.eq.s32.totalorder %s28, 1
      %p240 = por %p238, %p239
      %p241 = scmp.ne.s32.totalorder %s230, %s231
      %p242 = scmp.eq.s32.totalorder %s28, 0
      %p243 = por %p241, %p242
      %p244 = scmp.ne.s32.totalorder %s230, %s231
      %p245 = scmp.eq.s32.totalorder %s29, 1
      %p246 = por %p244, %p245
      %p248 = scmp.ne.s32.totalorder %s231, %s247
      %p249 = scmp.eq.s32.totalorder %s29, 0
      %p250 = por %p248, %p249
      %p251 = scmp.le.s32.totalorder 1, %s23
      %p252 = scmp.lt.s32.totalorder %s23, 3
      %p253 = pnand %p251, %p252
      %p254 = pneg %p253
      // Predicated region
      $region9: #{tpu_custom_call.1} parent=5 // pred_check
        _
      $region10: #{tpu_custom_call.1} parent=5 // pred_check_branch
        %256 = sbr.rel (%p253) target = $region12
      $region11: #{tpu_custom_call.1} parent=5 // pred_region
        %s257 = ssub.s32 %s23, 1
        // Predicated region
        $region13: #{tpu_custom_call.1} parent=11 // pred_check
          %p258 = pneg %p61
        $region14: #{tpu_custom_call.1} parent=11 // pred_check_branch
          %260 = sbr.rel (%p258) target = $region16
        $region15: #{tpu_custom_call.1} parent=11 // pred_region
          %s261 = smul.u32 2, %s32
          %p262 = scmp.lt.s32.totalorder %s261, 1
          %s263 = scalar_select %p262, %s261, 1
          %s264 = smul.addr %s263, 8
          %s265 = scalar_lea.vmem %s0, %s264
          %s266 = smul.u32 2, %s32
        $region16: #{tpu_custom_call.1} parent=11 // pred_fallthru
          _
      $region12: #{tpu_custom_call.1} parent=5 // pred_fallthru
        _
      %p267 = scmp.lt.s32.totalorder %s23, 2
      // Predicated region
      $region17: #{tpu_custom_call.1} parent=5 // pred_check
        %p268 = pneg %p267
      $region18: #{tpu_custom_call.1} parent=5 // pred_check_branch
        %270 = sbr.rel (%p268) target = $region20
      $region19: #{tpu_custom_call.1} parent=5 // pred_region
        // Predicated region
        $region21: #{tpu_custom_call.1} parent=19 // pred_check
          %p271 = pneg %p81
        $region22: #{tpu_custom_call.1} parent=19 // pred_check_branch
          %273 = sbr.rel (%p271) target = $region24
        $region23: #{tpu_custom_call.1} parent=19 // pred_region
          %s274 = sand.u32 %s71, 1
          %s275 = scalar_lea.sflag [#allocation5], %s274
          %s276 = sand.u32 %s71, 1
          %s277 = smul.addr %s276, 8
          %s278 = scalar_lea.vmem [#allocation4], %s277
          %s280 = ssub.s32 128, 128
          %281 = vsyncadd %s275, %s280
          %s282 = smul.addr %s31, 128
          %s283 = scalar_lea.hbm %s1, %s282
          %s285 = sshll.u32 %s278, 4
          %s286 = int_to_ptr.vmem [resolvable:$true] %s285
          %288 = dma.hbm_to_vmem [thread:$0]  %s283, 128, %s286, %s275
        $region24: #{tpu_custom_call.1} parent=19 // pred_fallthru
          _
        // Predicated region
        $region25: #{tpu_custom_call.1} parent=19 // pred_check
          %p289 = pneg %p107
        $region26: #{tpu_custom_call.1} parent=19 // pred_check_branch
          %291 = sbr.rel (%p289) target = $region28
        $region27: #{tpu_custom_call.1} parent=19 // pred_region
          %p292 = scmp.lt.s32.totalorder %s31, 1
          %s293 = scalar_select %p292, %s31, 1
          %s294 = smul.addr %s293, 8
          %s295 = scalar_lea.vmem %s2, %s294
        $region28: #{tpu_custom_call.1} parent=19 // pred_fallthru
          _
        // Predicated region
        $region29: #{tpu_custom_call.1} parent=19 // pred_check
          %p296 = pneg %p133
        $region30: #{tpu_custom_call.1} parent=19 // pred_check_branch
          %298 = sbr.rel (%p296) target = $region32
        $region31: #{tpu_custom_call.1} parent=19 // pred_region
          %s299 = sand.u32 %s23, 1
          %s300 = scalar_lea.sflag [#allocation8], %s299
          %s301 = sand.u32 %s123, 1
          %s302 = smul.addr %s301, 8
          %s303 = scalar_lea.vmem [#allocation7], %s302
          %s305 = ssub.s32 128, 128
          %306 = vsyncadd %s300, %s305
          %s307 = smul.addr %s31, 2
          %s308 = smul.addr %s307, 64
          %s309 = scalar_lea.hbm %s3, %s308
          %s310 = sshll.u32 %s303, 4
          %s311 = int_to_ptr.vmem [resolvable:$true] %s310
          %316 = dma.hbm_to_vmem [thread:$0]  %s309, 128, %s311, %s300, 64, 64, 4
        $region32: #{tpu_custom_call.1} parent=19 // pred_fallthru
          _
        // Predicated region
        $region33: #{tpu_custom_call.1} parent=19 // pred_check
          %p317 = pneg %p159
        $region34: #{tpu_custom_call.1} parent=19 // pred_check_branch
          %319 = sbr.rel (%p317) target = $region36
        $region35: #{tpu_custom_call.1} parent=19 // pred_region
          %s320 = sand.u32 %s23, 1
          %s321 = scalar_lea.sflag [#allocation8], %s320
          %s322 = sand.u32 %s149, 1
          %s323 = smul.addr %s322, 8
          %s324 = scalar_lea.vmem [#allocation9], %s323
          %s326 = ssub.s32 128, 128
          %327 = vsyncadd %s321, %s326
          %s328 = smul.addr %s31, 2
          %s329 = smul.addr %s328, 64
          %s330 = scalar_lea.hbm %s4, %s329
          %s331 = sshll.u32 %s324, 4
          %s332 = int_to_ptr.vmem [resolvable:$true] %s331
          %337 = dma.hbm_to_vmem [thread:$0]  %s330, 128, %s332, %s321, 64, 64, 4
        $region36: #{tpu_custom_call.1} parent=19 // pred_fallthru
          _
        // Predicated region
        $region37: #{tpu_custom_call.1} parent=19 // pred_check
          %p338 = pneg %p185
        $region38: #{tpu_custom_call.1} parent=19 // pred_check_branch
          %340 = sbr.rel (%p338) target = $region40
        $region39: #{tpu_custom_call.1} parent=19 // pred_region
          %p341 = scmp.lt.s32.totalorder %s31, 1
          %s342 = scalar_select %p341, %s31, 1
          %s343 = smul.addr %s342, 4
          %s344 = scalar_lea.vmem %s5, %s343
        $region40: #{tpu_custom_call.1} parent=19 // pred_fallthru
          _
        // Predicated region
        $region41: #{tpu_custom_call.1} parent=19 // pred_check
          %p345 = pneg %p211
        $region42: #{tpu_custom_call.1} parent=19 // pred_check_branch
          %347 = sbr.rel (%p345) target = $region44
        $region43: #{tpu_custom_call.1} parent=19 // pred_region
          %s348 = sand.u32 %s201, 1
          %s349 = scalar_lea.sflag [#allocation11], %s348
          %s350 = sand.u32 %s201, 1
          %s351 = smul.addr %s350, 8
          %s352 = scalar_lea.vmem [#allocation10], %s351
          %s354 = ssub.s32 128, 128
          %355 = vsyncadd %s349, %s354
          %s356 = smul.addr %s31, 2
          %s357 = smul.addr %s356, 64
          %s358 = scalar_lea.hbm %s6, %s357
          %s359 = sshll.u32 %s352, 4
          %s360 = int_to_ptr.vmem [resolvable:$true] %s359
          %365 = dma.hbm_to_vmem [thread:$0]  %s358, 128, %s360, %s349, 64, 64, 4
        $region44: #{tpu_custom_call.1} parent=19 // pred_fallthru
          _
      $region20: #{tpu_custom_call.1} parent=5 // pred_fallthru
        _
      %p366 = scmp.le.s32.totalorder 1, %s23
      %p367 = scmp.lt.s32.totalorder %s23, 3
      %p368 = pnand %p366, %p367
      %p369 = pneg %p368
      // Predicated region
      $region45: #{tpu_custom_call.1} parent=5 // pred_check
        _
      $region46: #{tpu_custom_call.1} parent=5 // pred_check_branch
        %371 = sbr.rel (%p368) target = $region48
      $region47: #{tpu_custom_call.1} parent=5 // pred_region
        %s372 = ssub.s32 %s23, 1
        %s373 = sand.u32 %s74, 1
        %s374 = scalar_lea.sflag [#allocation5], %s373
        %s375 = sand.u32 %s74, 1
        %s376 = smul.addr %s375, 8
        %s377 = scalar_lea.vmem [#allocation4], %s376
        // Predicated region
        $region49: #{tpu_custom_call.1} parent=47 // pred_check
          %p378 = pneg %p87
        $region50: #{tpu_custom_call.1} parent=47 // pred_check_branch
          %380 = sbr.rel (%p378) target = $region52
        $region51: #{tpu_custom_call.1} parent=47 // pred_region
          %381 = dma.done %s374, 128
        $region52: #{tpu_custom_call.1} parent=47 // pred_fallthru
          _
        %s382 = sand.u32 %s28, 1
        %s383 = scalar_lea.sflag [#allocation8], %s382
        %s384 = sand.u32 %s126, 1
        %s385 = smul.addr %s384, 8
        %s386 = scalar_lea.vmem [#allocation7], %s385
        // Predicated region
        $region53: #{tpu_custom_call.1} parent=47 // pred_check
          %p387 = pneg %p139
        $region54: #{tpu_custom_call.1} parent=47 // pred_check_branch
          %389 = sbr.rel (%p387) target = $region56
        $region55: #{tpu_custom_call.1} parent=47 // pred_region
          %390 = dma.done %s383, 128
        $region56: #{tpu_custom_call.1} parent=47 // pred_fallthru
          _
        %s391 = sand.u32 %s28, 1
        %s392 = scalar_lea.sflag [#allocation8], %s391
        %s393 = sand.u32 %s152, 1
        %s394 = smul.addr %s393, 8
        %s395 = scalar_lea.vmem [#allocation9], %s394
        // Predicated region
        $region57: #{tpu_custom_call.1} parent=47 // pred_check
          %p396 = pneg %p165
        $region58: #{tpu_custom_call.1} parent=47 // pred_check_branch
          %398 = sbr.rel (%p396) target = $region60
        $region59: #{tpu_custom_call.1} parent=47 // pred_region
          %399 = dma.done %s392, 128
        $region60: #{tpu_custom_call.1} parent=47 // pred_fallthru
          _
        %s400 = sand.u32 %s204, 1
        %s401 = scalar_lea.sflag [#allocation11], %s400
        %s402 = sand.u32 %s204, 1
        %s403 = smul.addr %s402, 8
        %s404 = scalar_lea.vmem [#allocation10], %s403
        // Predicated region
        $region61: #{tpu_custom_call.1} parent=47 // pred_check
          %p405 = pneg %p217
        $region62: #{tpu_custom_call.1} parent=47 // pred_check_branch
          %407 = sbr.rel (%p405) target = $region64
        $region63: #{tpu_custom_call.1} parent=47 // pred_region
          %408 = dma.done %s401, 128
        $region64: #{tpu_custom_call.1} parent=47 // pred_fallthru
          _
        %s409 = smul.u32 2, %s32
        %p410 = scmp.lt.s32.totalorder %s409, 1
        %s411 = scalar_select %p410, %s409, 1
        %s412 = smul.addr %s411, 8
        %s413 = scalar_lea.vmem %s0, %s412
        %p414 = pneg %p61
        %p415 = pneg %p58
        %s416 = sand.u32 %s74, 1
        %s417 = scalar_lea.sflag [#allocation5], %s416
        %s418 = sand.u32 %s74, 1
        %s419 = smul.addr %s418, 8
        %s420 = scalar_lea.vmem [#allocation4], %s419
        %p421 = pneg %p87
        %p422 = pneg %p84
        %p423 = scmp.lt.s32.totalorder %s33, 1
        %s424 = scalar_select %p423, %s33, 1
        %s425 = smul.addr %s424, 8
        %s426 = scalar_lea.vmem %s2, %s425
        %p427 = pneg %p113
        %p428 = pneg %p110
        %s429 = sand.u32 %s28, 1
        %s430 = scalar_lea.sflag [#allocation8], %s429
        %s431 = sand.u32 %s126, 1
        %s432 = smul.addr %s431, 8
        %s433 = scalar_lea.vmem [#allocation7], %s432
        %p434 = pneg %p139
        %p435 = pneg %p136
        %s436 = sand.u32 %s28, 1
        %s437 = scalar_lea.sflag [#allocation8], %s436
        %s438 = sand.u32 %s152, 1
        %s439 = smul.addr %s438, 8
        %s440 = scalar_lea.vmem [#allocation9], %s439
        %p441 = pneg %p165
        %p442 = pneg %p162
        %p443 = scmp.lt.s32.totalorder %s33, 1
        %s444 = scalar_select %p443, %s33, 1
        %s445 = smul.addr %s444, 4
        %s446 = scalar_lea.vmem %s5, %s445
        %p447 = pneg %p191
        %p448 = pneg %p188
        %s449 = sand.u32 %s204, 1
        %s450 = scalar_lea.sflag [#allocation11], %s449
        %s451 = sand.u32 %s204, 1
        %s452 = smul.addr %s451, 8
        %s453 = scalar_lea.vmem [#allocation10], %s452
        %p454 = pneg %p217
        %p455 = pneg %p214
        %p456 = pneg %p243
        %p457 = pneg %p240
        %s458 = smul.u32 2, %s32
        %p459 = scmp.lt.s32.totalorder %s458, 1
        %s460 = scalar_select %p459, %s458, 1
        %s461 = smul.addr %s460, 8
        %s462 = scalar_lea.vmem %s0, %s461
        %s463 = smul.u32 2, %s32
        %p464 = scmp.lt.s32.totalorder %s33, 1
        %s465 = scalar_select %p464, %s33, 1
        %s466 = smul.addr %s465, 8
        %s467 = scalar_lea.vmem %s2, %s466
        %p468 = scmp.lt.s32.totalorder %s33, 1
        %s469 = scalar_select %p468, %s33, 1
        %s470 = smul.addr %s469, 4
        %s471 = scalar_lea.vmem %s5, %s470
        %s472 = smul.u32 2, %s32
        %p474 = scmp.eq.s32.totalorder %s33, 0
        // Predicated region
        $region65: #{tpu_custom_call.1} parent=47 // pred_check
          %p475 = pneg %p474
        $region66: #{tpu_custom_call.1} parent=47 // pred_check_branch
          %477 = sbr.rel (%p475) target = $region68
        $region67: #{tpu_custom_call.1} parent=47 // pred_region
          %v478 = vld [vmem:[%s462] sm:$0xff]
          %v479 = vld [vmem:[%s462 + $0x8] sm:$0xff]
          %vm480 = vcmask 130048
          %481 = vst.msk [vmem:[#allocation2] sm:$0xff] %vm480, %v478
          %482 = vst.msk [vmem:[#allocation2 + $0x8] sm:$0xff] %vm480, %v479
        $region68: #{tpu_custom_call.1} parent=47 // pred_fallthru
          _
        %v483 = vld [vmem:[#allocation2] sm:$0xff]
        %v484 = vld [vmem:[#allocation2 + $0x8] sm:$0xff]
        %v485 = vld [vmem:[%s377] sm:$0x1]
        %v486 = vld [vmem:[%s377 + $0x1] sm:$0x1]
        %v487 = vld [vmem:[%s377 + $0x2] sm:$0x1]
        %v488 = vld [vmem:[%s377 + $0x3] sm:$0x1]
        %v489 = vld [vmem:[%s377 + $0x4] sm:$0x1]
        %v490 = vld [vmem:[%s377 + $0x5] sm:$0x1]
        %v491 = vld [vmem:[%s377 + $0x6] sm:$0x1]
        %vm492 = vcmask 130048
        %v493 = vsel %vm492, %v483, 0.0
        %494 = vadd.xlane.f32.xlu0 %v493
        %v495 = vpop.xlane.xlu0 %494
        %v496 = vsel %vm492, %v484, 0.0
        %497 = vadd.xlane.f32.xlu0 %v496
        %v498 = vpop.xlane.xlu0 %497
        %v499 = vrcp.pop 16.0
        %v500 = vmul.f32 %v495, %v499
        %v501 = vmul.f32 %v498, %v499
        %v502 = vsub.f32 %v483, %v500
        %v503 = vsub.f32 %v484, %v501
        %v504 = vmul.f32 %v502, %v502
        %v505 = vmul.f32 %v503, %v503
        %v506 = vsel %vm492, %v504, 0.0
        %507 = vadd.xlane.f32.xlu0 %v506
        %v508 = vpop.xlane.xlu0 %507
        %v509 = vsel %vm492, %v505, 0.0
        %510 = vadd.xlane.f32.xlu0 %v509
        %v511 = vpop.xlane.xlu0 %510
        %v512 = vmul.f32 %v508, %v499
        %v513 = vmul.f32 %v511, %v499
        %v514 = vadd.f32 %v512, 1e-05
        %v515 = vadd.f32 %v513, 1e-05
        %v516 = vrsqrt.pop %v514
        %v517 = vrsqrt.pop %v515
        %v518 = vmul.f32 %v502, %v516
        %v519 = vmul.f32 %v503, %v517
        %v520 = vlaneseq
        %v521 = vshrl.u32 %v520, 7
        %v522 = vsub.s32 0, %v521
        %v523 = vrot.slane %v485, %v522
        %v524 = vmul.f32 %v518, %v523
        %v525 = vmul.f32 %v519, %v523
        %v526 = vlaneseq
        %v527 = vshrl.u32 %v526, 7
        %v528 = vsub.s32 0, %v527
        %v529 = vrot.slane %v486, %v528
        %v530 = vadd.f32 %v524, %v529
        %v531 = vadd.f32 %v525, %v529
        %v532 = vpack.c.bf16 %v531, %v530
        %v533 = vld [vmem:[%s395] sm:$0xf]
        %v534 = vld [vmem:[%s395 + $0x4] sm:$0xf]
        %v535 = vlaneseq
        %v536 = vshrl.u32 %v535, 7
        %v537 = vsub.s32 0, %v536
        %v538 = vrot.slane %v488, %v537
        %v541 = vunpack.c.l.b16 %v533
        %v542 = vunpack.c.l.b16 %v534
        %v543 = vpack.c.b16 %v542, %v541
        %v546 = vsel %vm492, %v532, 0
        %548 = vmatprep.subr.bf16.mxu0 0
        %549 = vmatpush1.bf16.msra.mxu0 0
        %550 = vmatprep.subr.bf16.mxu0 0
        %551 = vmatpush1.bf16.msra.mxu0 0
        %552 = vmatprep.subr.bf16.mxu0 0
        %553 = vmatpush1.bf16.msra.mxu0 0
        %554 = vmatprep.subr.bf16.mxu0 0
        %555 = vmatpush1.bf16.msra.mxu0 0
        %556 = vmatprep.subr.bf16.mxu0 0
        %557 = vmatpush1.bf16.msra.mxu0 0
        %558 = vmatprep.subr.bf16.mxu0 0
        %559 = vmatpush1.bf16.msra.mxu0 0
        %560 = vmatprep.subr.bf16.mxu0 0
        %561 = vmatpush1.bf16.msra.mxu0 0
        %562 = vmatprep.subr.bf16.mxu0 0
        %563 = vmatpush1.bf16.msra.mxu0 %v543
        %564 = vmatprep.subr.bf16.mxu0 0
        %565 = vmatpush2.bf16.msra.mxu0 0
        %566 = vmatprep.subr.bf16.mxu0 0
        %567 = vmatpush2.bf16.msra.mxu0 0
        %568 = vmatprep.subr.bf16.mxu0 0
        %569 = vmatpush2.bf16.msra.mxu0 0
        %570 = vmatprep.subr.bf16.mxu0 0
        %571 = vmatpush2.bf16.msra.mxu0 0
        %572 = vmatprep.subr.bf16.mxu0 0
        %573 = vmatpush2.bf16.msra.mxu0 0
        %574 = vmatprep.subr.bf16.mxu0 0
        %575 = vmatpush2.bf16.msra.mxu0 0
        %576 = vmatprep.subr.bf16.mxu0 0
        %577 = vmatpush2.bf16.msra.mxu0 0
        %578 = vmatprep.subr.bf16.mxu0 0
        %579 = vmatpush2.bf16.msra.mxu0 0
        %580 = vmatprep.mubr.bf16.mxu0 0
        %581 = vmatmul.mubr.bf16.gmra.mxu0 %v546
        %v582 = vpop.f32.mrf.mxu0
        %v583 = vadd.f32 %v538, %v582
        %v584 = vpop.f32.mrf.mxu0
        %v585 = vpop.f32.mrf.mxu0
        %v586 = vadd.f32 %v538, %v585
        %v587 = vpop.f32.mrf.mxu0
        %588 = vdwg.mxu0
        %v589 = vmul.f32 %v583, 0.5
        %v590 = vmul.f32 %v586, 0.5
        %v591 = vmul.f32 %v583, %v583
        %v592 = vmul.f32 %v586, %v586
        %v593 = vmul.f32 %v591, %v583
        %v594 = vmul.f32 %v592, %v586
        %v595 = vmul.f32 %v593, 0.044715
        %v596 = vmul.f32 %v594, 0.044715
        %v597 = vadd.f32 %v583, %v595
        %v598 = vadd.f32 %v586, %v596
        %v599 = vmul.f32 %v597, 0.7978846
        %v600 = vmul.f32 %v598, 0.7978846
        %v601 = vtanh.pop %v599
        %v602 = vtanh.pop %v600
        %v603 = vadd.f32 %v601, 1.0
        %v604 = vadd.f32 %v602, 1.0
        %v605 = vmul.f32 %v589, %v603
        %v606 = vmul.f32 %v590, %v604
        %v607 = vsel %vm492, %v605, 0.0
        %608 = vadd.xlane.f32.xlu0 %v607
        %v609 = vpop.xlane.xlu0 %608
        %v610 = vsel %vm492, %v606, 0.0
        %611 = vadd.xlane.f32.xlu0 %v610
        %v612 = vpop.xlane.xlu0 %611
        %v613 = vmul.f32 %v609, %v499
        %v614 = vmul.f32 %v612, %v499
        %v615 = vsub.f32 %v605, %v613
        %v616 = vsub.f32 %v606, %v614
        %v617 = vmul.f32 %v615, %v615
        %v618 = vmul.f32 %v616, %v616
        %v619 = vsel %vm492, %v617, 0.0
        %620 = vadd.xlane.f32.xlu0 %v619
        %v621 = vpop.xlane.xlu0 %620
        %v622 = vsel %vm492, %v618, 0.0
        %623 = vadd.xlane.f32.xlu0 %v622
        %v624 = vpop.xlane.xlu0 %623
        %v625 = vmul.f32 %v621, %v499
        %v626 = vmul.f32 %v624, %v499
        %v627 = vadd.f32 %v625, 1e-05
        %v628 = vadd.f32 %v626, 1e-05
        %v629 = vrsqrt.pop %v627
        %v630 = vrsqrt.pop %v628
        %v631 = vmul.f32 %v615, %v629
        %v632 = vmul.f32 %v616, %v630
        %v633 = vlaneseq
        %v634 = vshrl.u32 %v633, 7
        %v635 = vsub.s32 0, %v634
        %v636 = vrot.slane %v489, %v635
        %v637 = vmul.f32 %v631, %v636
        %v638 = vmul.f32 %v632, %v636
        %v639 = vlaneseq
        %v640 = vshrl.u32 %v639, 7
        %v641 = vsub.s32 0, %v640
        %v642 = vrot.slane %v490, %v641
        %v643 = vadd.f32 %v637, %v642
        %v644 = vadd.f32 %v638, %v642
        %v645 = vpack.c.bf16 %v643, %v643
        %vm646 = vcmask 125952
        %647 = vst.msk [vmem:[#allocation3] sm:$0xf] %vm646, %v645
        %v648 = vpack.c.bf16 %v644, %v644
        %v650 = vunpack.c.l.b16 %v648
        %v651 = vpack.c.b16 %v650, %v650
        %652 = vrot.lane.b32.xlu0 %v651, 16
        %v653 = vpop.permute.xlu0 %652
        %vm655 = vcmask 257152
        %656 = vst.msk [vmem:[#allocation3] sm:$0xf] %vm655, %v653
        %v657 = vld [vmem:[#allocation3] sm:$0xf]
        %v658 = vld [vmem:[%s471] sm:$0xf]
        %v659 = vld [vmem:[%s467] sm:$0xff]
        %661 = vset.pattern.permute.xlu0 0
        %662 = vperm.xlu0 %661, %v659
        %v663 = vpop.permute.xlu0 %662
        %vm665 = vcmask 64512
        %v667 = vsel %vm665, %v658, 0
        %vm669 = vcmask 1043456
        %v671 = vsel %vm669, %v657, 0
        %673 = vmatprep.subr.bf16.mxu0 0
        %674 = vmatpush1.bf16.msra.mxu0 0
        %675 = vmatprep.subr.bf16.mxu0 0
        %676 = vmatpush1.bf16.msra.mxu0 0
        %677 = vmatprep.subr.bf16.mxu0 0
        %678 = vmatpush1.bf16.msra.mxu0 0
        %679 = vmatprep.subr.bf16.mxu0 0
        %680 = vmatpush1.bf16.msra.mxu0 0
        %681 = vmatprep.subr.bf16.mxu0 0
        %682 = vmatpush1.bf16.msra.mxu0 0
        %683 = vmatprep.subr.bf16.mxu0 0
        %684 = vmatpush1.bf16.msra.mxu0 0
        %685 = vmatprep.subr.bf16.mxu0 0
        %686 = vmatpush1.bf16.msra.mxu0 0
        %687 = vmatprep.subr.bf16.mxu0 0
        %688 = vmatpush1.bf16.msra.mxu0 %v671
        %689 = vmatprep.subr.bf16.mxu0 0
        %690 = vmatpush2.bf16.msra.mxu0 0
        %691 = vmatprep.subr.bf16.mxu0 0
        %692 = vmatpush2.bf16.msra.mxu0 0
        %693 = vmatprep.subr.bf16.mxu0 0
        %694 = vmatpush2.bf16.msra.mxu0 0
        %695 = vmatprep.subr.bf16.mxu0 0
        %696 = vmatpush2.bf16.msra.mxu0 0
        %697 = vmatprep.subr.bf16.mxu0 0
        %698 = vmatpush2.bf16.msra.mxu0 0
        %699 = vmatprep.subr.bf16.mxu0 0
        %700 = vmatpush2.bf16.msra.mxu0 0
        %701 = vmatprep.subr.bf16.mxu0 0
        %702 = vmatpush2.bf16.msra.mxu0 0
        %703 = vmatprep.subr.bf16.mxu0 0
        %704 = vmatpush2.bf16.msra.mxu0 0
        %705 = vmatprep.mubr.bf16.mxu0 0
        %706 = vmatmul.mubr.bf16.gmra.mxu0 %v667
        %v707 = vpop.f32.mrf.mxu0
        %v708 = vadd.f32 %v663, %v707
        %v709 = vpop.f32.mrf.mxu0
        %v710 = vpop.f32.mrf.mxu0
        %v711 = vpop.f32.mrf.mxu0
        %712 = vdwg.mxu0
        %v713 = vld [vmem:[%s386] sm:$0xf]
        %v714 = vld [vmem:[%s386 + $0x4] sm:$0xf]
        %v715 = vlaneseq
        %v716 = vshrl.u32 %v715, 7
        %v717 = vsub.s32 0, %v716
        %v718 = vrot.slane %v487, %v717
        %v721 = vunpack.c.l.b16 %v713
        %v722 = vunpack.c.l.b16 %v714
        %v723 = vpack.c.b16 %v722, %v721
        %725 = vmatprep.subr.bf16.mxu0 0
        %726 = vmatpush1.bf16.msra.mxu0 0
        %727 = vmatprep.subr.bf16.mxu0 0
        %728 = vmatpush1.bf16.msra.mxu0 0
        %729 = vmatprep.subr.bf16.mxu0 0
        %730 = vmatpush1.bf16.msra.mxu0 0
        %731 = vmatprep.subr.bf16.mxu0 0
        %732 = vmatpush1.bf16.msra.mxu0 0
        %733 = vmatprep.subr.bf16.mxu0 0
        %734 = vmatpush1.bf16.msra.mxu0 0
        %735 = vmatprep.subr.bf16.mxu0 0
        %736 = vmatpush1.bf16.msra.mxu0 0
        %737 = vmatprep.subr.bf16.mxu0 0
        %738 = vmatpush1.bf16.msra.mxu0 0
        %739 = vmatprep.subr.bf16.mxu0 0
        %740 = vmatpush1.bf16.msra.mxu0 %v723
        %741 = vmatprep.subr.bf16.mxu0 0
        %742 = vmatpush2.bf16.msra.mxu0 0
        %743 = vmatprep.subr.bf16.mxu0 0
        %744 = vmatpush2.bf16.msra.mxu0 0
        %745 = vmatprep.subr.bf16.mxu0 0
        %746 = vmatpush2.bf16.msra.mxu0 0
        %747 = vmatprep.subr.bf16.mxu0 0
        %748 = vmatpush2.bf16.msra.mxu0 0
        %749 = vmatprep.subr.bf16.mxu0 0
        %750 = vmatpush2.bf16.msra.mxu0 0
        %751 = vmatprep.subr.bf16.mxu0 0
        %752 = vmatpush2.bf16.msra.mxu0 0
        %753 = vmatprep.subr.bf16.mxu0 0
        %754 = vmatpush2.bf16.msra.mxu0 0
        %755 = vmatprep.subr.bf16.mxu0 0
        %756 = vmatpush2.bf16.msra.mxu0 0
        %757 = vmatprep.mubr.bf16.mxu0 0
        %758 = vmatmul.mubr.bf16.gmra.mxu0 %v546
        %v759 = vpop.f32.mrf.mxu0
        %v760 = vadd.f32 %v718, %v759
        %v761 = vpop.f32.mrf.mxu0
        %v762 = vpop.f32.mrf.mxu0
        %v763 = vadd.f32 %v718, %v762
        %v764 = vpop.f32.mrf.mxu0
        %765 = vdwg.mxu0
        %v766 = vmul.f32 %v760, 0.5
        %v767 = vmul.f32 %v763, 0.5
        %v768 = vmul.f32 %v760, %v760
        %v769 = vmul.f32 %v763, %v763
        %v770 = vmul.f32 %v768, %v760
        %v771 = vmul.f32 %v769, %v763
        %v772 = vmul.f32 %v770, 0.044715
        %v773 = vmul.f32 %v771, 0.044715
        %v774 = vadd.f32 %v760, %v772
        %v775 = vadd.f32 %v763, %v773
        %v776 = vmul.f32 %v774, 0.7978846
        %v777 = vmul.f32 %v775, 0.7978846
        %v778 = vtanh.pop %v776
        %v779 = vtanh.pop %v777
        %v780 = vadd.f32 %v778, 1.0
        %v781 = vadd.f32 %v779, 1.0
        %v782 = vmul.f32 %v766, %v780
        %v783 = vmul.f32 %v767, %v781
        %v784 = vmul.f32 %v782, %v708
        %v785 = vpack.c.bf16 %v784, %v784
        %v786 = vld [vmem:[%s404] sm:$0xf]
        %v787 = vld [vmem:[%s404 + $0x4] sm:$0xf]
        %v788 = vlaneseq
        %v789 = vshrl.u32 %v788, 7
        %v790 = vsub.s32 0, %v789
        %v791 = vrot.slane %v491, %v790
        %v794 = vunpack.c.l.b16 %v786
        %v795 = vunpack.c.l.b16 %v787
        %v796 = vpack.c.b16 %v795, %v794
        %v799 = vsel %vm492, %v785, 0
        %801 = vmatprep.subr.bf16.mxu0 0
        %802 = vmatpush1.bf16.msra.mxu0 0
        %803 = vmatprep.subr.bf16.mxu0 0
        %804 = vmatpush1.bf16.msra.mxu0 0
        %805 = vmatprep.subr.bf16.mxu0 0
        %806 = vmatpush1.bf16.msra.mxu0 0
        %807 = vmatprep.subr.bf16.mxu0 0
        %808 = vmatpush1.bf16.msra.mxu0 0
        %809 = vmatprep.subr.bf16.mxu0 0
        %810 = vmatpush1.bf16.msra.mxu0 0
        %811 = vmatprep.subr.bf16.mxu0 0
        %812 = vmatpush1.bf16.msra.mxu0 0
        %813 = vmatprep.subr.bf16.mxu0 0
        %814 = vmatpush1.bf16.msra.mxu0 0
        %815 = vmatprep.subr.bf16.mxu0 0
        %816 = vmatpush1.bf16.msra.mxu0 %v796
        %817 = vmatprep.subr.bf16.mxu0 0
        %818 = vmatpush2.bf16.msra.mxu0 0
        %819 = vmatprep.subr.bf16.mxu0 0
        %820 = vmatpush2.bf16.msra.mxu0 0
        %821 = vmatprep.subr.bf16.mxu0 0
        %822 = vmatpush2.bf16.msra.mxu0 0
        %823 = vmatprep.subr.bf16.mxu0 0
        %824 = vmatpush2.bf16.msra.mxu0 0
        %825 = vmatprep.subr.bf16.mxu0 0
        %826 = vmatpush2.bf16.msra.mxu0 0
        %827 = vmatprep.subr.bf16.mxu0 0
        %828 = vmatpush2.bf16.msra.mxu0 0
        %829 = vmatprep.subr.bf16.mxu0 0
        %830 = vmatpush2.bf16.msra.mxu0 0
        %831 = vmatprep.subr.bf16.mxu0 0
        %832 = vmatpush2.bf16.msra.mxu0 0
        %833 = vmatprep.mubr.bf16.mxu0 0
        %834 = vmatmul.mubr.bf16.gmra.mxu0 %v799
        %v835 = vpop.f32.mrf.mxu0
        %v836 = vadd.f32 %v791, %v835
        %v837 = vpop.f32.mrf.mxu0
        %v838 = vpop.f32.mrf.mxu0
        %v839 = vpop.f32.mrf.mxu0
        %840 = vdwg.mxu0
        %v841 = vadd.f32 %v836, %v483
        %p842 = scmp.ne.s32.totalorder %s33, 1
        // Predicated region
        $region69: #{tpu_custom_call.1} parent=47 // pred_check
          %p843 = pneg %p842
        $region70: #{tpu_custom_call.1} parent=47 // pred_check_branch
          %845 = sbr.rel (%p843) target = $region72
        $region71: #{tpu_custom_call.1} parent=47 // pred_region
          %846 = vst.msk [vmem:[#allocation2] sm:$0xff] %vm492, %v841
        $region72: #{tpu_custom_call.1} parent=47 // pred_fallthru
          _
        %p847 = scmp.eq.s32.totalorder %s33, 1
        // Predicated region
        $region73: #{tpu_custom_call.1} parent=47 // pred_check
          %p848 = pneg %p847
        $region74: #{tpu_custom_call.1} parent=47 // pred_check_branch
          %850 = sbr.rel (%p848) target = $region76
        $region75: #{tpu_custom_call.1} parent=47 // pred_region
          %851 = vst.msk [vmem:[#allocation12] sm:$0xff] %vm492, %v841
        $region76: #{tpu_custom_call.1} parent=47 // pred_fallthru
          _
        %853 = vrot.lane.b32.xlu0 %v708, 112
        %v854 = vpop.permute.xlu0 %853
        %v856 = vmul.f32 %v783, %v854
        %v857 = vpack.c.bf16 %v856, %v856
        %v858 = vld [vmem:[%s404] sm:$0xf]
        %v859 = vld [vmem:[%s404 + $0x4] sm:$0xf]
        %v862 = vunpack.c.l.b16 %v858
        %v863 = vunpack.c.l.b16 %v859
        %v864 = vpack.c.b16 %v863, %v862
        %v867 = vsel %vm492, %v857, 0
        %869 = vmatprep.subr.bf16.mxu0 0
        %870 = vmatpush1.bf16.msra.mxu0 0
        %871 = vmatprep.subr.bf16.mxu0 0
        %872 = vmatpush1.bf16.msra.mxu0 0
        %873 = vmatprep.subr.bf16.mxu0 0
        %874 = vmatpush1.bf16.msra.mxu0 0
        %875 = vmatprep.subr.bf16.mxu0 0
        %876 = vmatpush1.bf16.msra.mxu0 0
        %877 = vmatprep.subr.bf16.mxu0 0
        %878 = vmatpush1.bf16.msra.mxu0 0
        %879 = vmatprep.subr.bf16.mxu0 0
        %880 = vmatpush1.bf16.msra.mxu0 0
        %881 = vmatprep.subr.bf16.mxu0 0
        %882 = vmatpush1.bf16.msra.mxu0 0
        %883 = vmatprep.subr.bf16.mxu0 0
        %884 = vmatpush1.bf16.msra.mxu0 %v864
        %885 = vmatprep.subr.bf16.mxu0 0
        %886 = vmatpush2.bf16.msra.mxu0 0
        %887 = vmatprep.subr.bf16.mxu0 0
        %888 = vmatpush2.bf16.msra.mxu0 0
        %889 = vmatprep.subr.bf16.mxu0 0
        %890 = vmatpush2.bf16.msra.mxu0 0
        %891 = vmatprep.subr.bf16.mxu0 0
        %892 = vmatpush2.bf16.msra.mxu0 0
        %893 = vmatprep.subr.bf16.mxu0 0
        %894 = vmatpush2.bf16.msra.mxu0 0
        %895 = vmatprep.subr.bf16.mxu0 0
        %896 = vmatpush2.bf16.msra.mxu0 0
        %897 = vmatprep.subr.bf16.mxu0 0
        %898 = vmatpush2.bf16.msra.mxu0 0
        %899 = vmatprep.subr.bf16.mxu0 0
        %900 = vmatpush2.bf16.msra.mxu0 0
        %901 = vmatprep.mubr.bf16.mxu0 0
        %902 = vmatmul.mubr.bf16.gmra.mxu0 %v867
        %v903 = vpop.f32.mrf.mxu0
        %v904 = vadd.f32 %v791, %v903
        %v905 = vpop.f32.mrf.mxu0
        %v906 = vpop.f32.mrf.mxu0
        %v907 = vpop.f32.mrf.mxu0
        %908 = vdwg.mxu0
        %v909 = vadd.f32 %v904, %v484
        // Predicated region
        $region77: #{tpu_custom_call.1} parent=47 // pred_check
          %p910 = pneg %p842
        $region78: #{tpu_custom_call.1} parent=47 // pred_check_branch
          %912 = sbr.rel (%p910) target = $region80
        $region79: #{tpu_custom_call.1} parent=47 // pred_region
          %913 = vst.msk [vmem:[#allocation2 + $0x8] sm:$0xff] %vm492, %v909
        $region80: #{tpu_custom_call.1} parent=47 // pred_fallthru
          _
        // Predicated region
        $region81: #{tpu_custom_call.1} parent=47 // pred_check
          %p914 = pneg %p847
        $region82: #{tpu_custom_call.1} parent=47 // pred_check_branch
          %916 = sbr.rel (%p914) target = $region84
        $region83: #{tpu_custom_call.1} parent=47 // pred_region
          %s917 = scalar_lea.vmem [#allocation12], 8
          %918 = vst.msk [vmem:[%s917] sm:$0xff] %vm492, %v909
        $region84: #{tpu_custom_call.1} parent=47 // pred_fallthru
          _
        // Predicated region
        $region85: #{tpu_custom_call.1} parent=47 // pred_check
          %p919 = pneg %p240
        $region86: #{tpu_custom_call.1} parent=47 // pred_check_branch
          %921 = sbr.rel (%p919) target = $region88
        $region87: #{tpu_custom_call.1} parent=47 // pred_region
          %s922 = smul.u32 2, %s32
          %s924 = ssub.s32 256, 256
          %925 = vsyncadd [#allocation6], %s924
          %s926 = smul.addr %s922, 128
          %s927 = scalar_lea.hbm %s7, %s926
          %s928 = sshll.u32 [#allocation12], 4
          %s929 = int_to_ptr.vmem [resolvable:$true] %s928
          %934 = dma.vmem_to_hbm [thread:$0]  %s929, 256, %s927, [#allocation6], 128, 128, 8
        $region88: #{tpu_custom_call.1} parent=47 // pred_fallthru
          _
        // Predicated region
        $region89: #{tpu_custom_call.1} parent=47 // pred_check
          %p935 = pneg %p240
        $region90: #{tpu_custom_call.1} parent=47 // pred_check_branch
          %937 = sbr.rel (%p935) target = $region92
        $region91: #{tpu_custom_call.1} parent=47 // pred_region
          %938 = dma.done [#allocation6], 256
        $region92: #{tpu_custom_call.1} parent=47 // pred_fallthru
          _
      $region48: #{tpu_custom_call.1} parent=5 // pred_fallthru
        _
      %p939 = scmp.le.s32.totalorder 2, %s23
      // Predicated region
      $region93: #{tpu_custom_call.1} parent=5 // pred_check
        %p940 = pneg %p939
      $region94: #{tpu_custom_call.1} parent=5 // pred_check_branch
        %942 = sbr.rel (%p940) target = $region96
      $region95: #{tpu_custom_call.1} parent=5 // pred_region
        %s943 = ssub.s32 %s23, 2
      $region96: #{tpu_custom_call.1} parent=5 // pred_fallthru
        _
    $region6: #{tpu_custom_call.1} parent=1 // loop_footer
      %s27 = sadd.s32 1, %s23
    $region7: #{tpu_custom_call.1} parent=1 // loop_footer_branch
      %22 = sbr.rel target = $region3
    $region8: #{tpu_custom_call.1} parent=1 // loop_exit
      _
    %944 = vsyncpa [#allocation5], 1
    %s945 = scalar_lea.sflag [#allocation5], 1
    %946 = vsyncpa %s945, 1
    %947 = vsyncpa [#allocation8], 1
    %s948 = scalar_lea.sflag [#allocation8], 1
    %949 = vsyncpa %s948, 1
    %950 = vsyncpa [#allocation11], 1
    %s951 = scalar_lea.sflag [#allocation11], 1
    %952 = vsyncpa %s951, 1
    %953 = vsyncpa [#allocation6], 1
    %s954 = scalar_lea.sflag [#allocation6], 1
    %955 = vsyncpa %s954, 1

</llo_original>
